<compile_context>
chip_gen: v5e
topology: v5e:2x2
jax: 0.10.0
libtpu: 0.0.40
codegen_flags: <defaults>
</compile_context>

<pallas_src>
import functools

import jax
import jax.numpy as jnp
from jax.experimental import pallas as pl
from jax.experimental.pallas import tpu as pltpu


def frn_kernel(x_ref, p_ref, o_ref, *, inv_l):
    # x_ref: (rb, L_pad) block.  p_ref: (rb, 4) = [|eps|, gamma, beta, tau].
    x = x_ref[...].astype(jnp.float32)
    # Padded lanes are zero, so summing over the padded width and dividing by
    # the true spatial size L gives the exact per-row mean of x^2.
    nu2 = jnp.sum(x * x, axis=-1, keepdims=True) * inv_l        # (rb, 1)
    p = p_ref[...].astype(jnp.float32)                          # (rb, 4)
    eps = p[:, 0:1]
    gamma = p[:, 1:2]
    beta = p[:, 2:3]
    tau = p[:, 3:4]
    scale = gamma * jax.lax.rsqrt(nu2 + eps)                    # (rb, 1)
    y = jnp.maximum(x * scale + beta, tau)
    o_ref[...] = y.astype(o_ref.dtype)


def _choose_row_block(R, L_pad, itemsize):
    """Pick a row-block so each (rb, L_pad) tile is ~4 MiB, rb % 8 == 0."""
    target_tile_bytes = 4 << 20
    rb = target_tile_bytes // (L_pad * itemsize)
    if rb >= R or R <= 8:
        # Whole-array block (always legal: block dim == full array dim).
        return R
    rb = max(8, (rb // 8) * 8)
    # Prefer >= 4 grid steps (megacore split on v7x) as long as tiles stay
    # >= ~1 MiB so per-step overhead remains negligible.
    steps = -(-R // rb)
    if steps < 4:
        rb4 = ((-(-R // 4) + 7) // 8) * 8
        if rb4 >= 8 and rb4 * L_pad * itemsize >= (1 << 20):
            rb = min(rb, rb4)
    return min(rb, R)


@jax.jit
def frn_forward(x, eps, gamma, beta, tau):
    """x: (N, C, H, W).  eps/gamma/beta/tau: (1, C, 1, 1)."""
    N, C, H, W = x.shape
    R = N * C
    L = H * W
    itemsize = jnp.dtype(x.dtype).itemsize

    # Lane-dense slab: pad spatial dim up to a multiple of 128 with zeros.
    L_pad = max(128, ((L + 127) // 128) * 128)
    x2d = x.reshape(R, L)
    if L_pad != L:
        x2d = jnp.pad(x2d, ((0, 0), (0, L_pad - L)))

    # Pack per-channel params into one (R, 4) f32 array, |eps| applied here.
    # Row order matches x.reshape(R, L): row = n*C + c.
    c_params = jnp.concatenate(
        [jnp.abs(eps).reshape(C, 1), gamma.reshape(C, 1),
         beta.reshape(C, 1), tau.reshape(C, 1)],
        axis=1,
    ).astype(jnp.float32)                                       # (C, 4)
    params = jnp.tile(c_params, (N, 1))                         # (R, 4)

    rb = _choose_row_block(R, L_pad, itemsize)
    grid = (pl.cdiv(R, rb),)

    # VMEM budget: ~2 in + 2 out buffers of the big tile plus small params.
    tile_bytes = rb * L_pad * itemsize
    vmem_budget = int(min(max(6 * tile_bytes + (4 << 20), 32 << 20), 60 << 20))

    row_spec = pl.BlockSpec((rb, L_pad), lambda i: (i, 0))
    par_spec = pl.BlockSpec((rb, 4), lambda i: (i, 0))
    out_spec = pl.BlockSpec((rb, L_pad), lambda i: (i, 0))

    kernel = functools.partial(frn_kernel, inv_l=float(1.0 / L))

    out2d = pl.pallas_call(
        kernel,
        out_shape=jax.ShapeDtypeStruct((R, L_pad), x.dtype),
        grid_spec=pltpu.PrefetchScalarGridSpec(
            num_scalar_prefetch=0,
            grid=grid,
            in_specs=[row_spec, par_spec],
            out_specs=out_spec,
        ),
        compiler_params=pltpu.CompilerParams(
            dimension_semantics=("parallel",),
            vmem_limit_bytes=vmem_budget,
        ),
    )(x2d, params)

    if L_pad != L:
        out2d = out2d[:, :L]
    return out2d.reshape(N, C, H, W)


def frn_reference(x, eps, gamma, beta, tau):
    nu2 = jnp.mean(x * x, axis=(2, 3), keepdims=True)
    xn = x / jnp.sqrt(nu2 + jnp.abs(eps))
    return jnp.maximum(gamma * xn + beta, tau)


if __name__ == "__main__":
    key = jax.random.PRNGKey(0)
    N, C, H, W = 2, 4, 16, 16

    x = jax.random.normal(key, (N, C, H, W), dtype=jnp.float32)

    # Deterministic parameter init matching FRN.reset_parameters():
    # gamma = beta = tau = 1, eps = 1e-6 (non-learnable).
    shape = (1, C, 1, 1)
    eps = jnp.full(shape, 1e-6, dtype=jnp.float32)
    gamma = jnp.ones(shape, dtype=jnp.float32)
    beta = jnp.ones(shape, dtype=jnp.float32)
    tau = jnp.ones(shape, dtype=jnp.float32)

    out = frn_forward(x, eps, gamma, beta, tau)
    out = jax.block_until_ready(out)

    ref = frn_reference(x, eps, gamma, beta, tau)
    assert out.shape == (N, C, H, W)
    assert jnp.allclose(out, ref, atol=1e-5, rtol=1e-5), "mismatch vs reference"

    print("KERNEL_OK")
</pallas_src>

<mosaic_0001>
module attributes {stable_mosaic.version = 11 : i64} {
  func.func @frn_kernel(%arg0: i32, %arg1: memref<8x256xf32, #tpu.memory_space<vmem>>, %arg2: memref<8x4xf32, #tpu.memory_space<vmem>>, %arg3: memref<8x256xf32, #tpu.memory_space<vmem>>) attributes {dimension_semantics = [#tpu.dimension_semantics<parallel>], iteration_bounds = array<i64: 1>, scalar_prefetch = 0 : i64, scratch_operands = 0 : i64, tpu.core_type = #tpu.core_type<tc>, window_params = [{transform_indices = @transform_0, window_bounds = array<i64: 8, 256>}, {transform_indices = @transform_1, window_bounds = array<i64: 8, 4>}, {transform_indices = @transform_2, window_bounds = array<i64: 8, 256>}]} {
    %c0 = arith.constant 0 : index
    %c0_0 = arith.constant 0 : index
    %0 = vector.load %arg1[%c0, %c0_0] : memref<8x256xf32, #tpu.memory_space<vmem>>, vector<8x256xf32>
    %1 = arith.mulf %0, %0 : vector<8x256xf32>
    %cst = arith.constant dense<0.000000e+00> : vector<8xf32>
    %2 = vector.multi_reduction <add>, %1, %cst [1] : vector<8x256xf32> to vector<8xf32>
    %3 = vector.shape_cast %2 : vector<8xf32> to vector<8x1xf32>
    %cst_1 = arith.constant 3.906250e-03 : f32
    %4 = vector.broadcast %cst_1 : f32 to vector<8x1xf32>
    %5 = arith.mulf %3, %4 : vector<8x1xf32>
    %c0_2 = arith.constant 0 : index
    %c0_3 = arith.constant 0 : index
    %6 = vector.load %arg2[%c0_2, %c0_3] : memref<8x4xf32, #tpu.memory_space<vmem>>, vector<8x4xf32>
    %7 = vector.extract_strided_slice %6 {offsets = [0, 0], sizes = [8, 1], strides = [1, 1]} : vector<8x4xf32> to vector<8x1xf32>
    %8 = vector.extract_strided_slice %6 {offsets = [0, 1], sizes = [8, 1], strides = [1, 1]} : vector<8x4xf32> to vector<8x1xf32>
    %9 = vector.extract_strided_slice %6 {offsets = [0, 2], sizes = [8, 1], strides = [1, 1]} : vector<8x4xf32> to vector<8x1xf32>
    %10 = vector.extract_strided_slice %6 {offsets = [0, 3], sizes = [8, 1], strides = [1, 1]} : vector<8x4xf32> to vector<8x1xf32>
    %11 = arith.addf %5, %7 : vector<8x1xf32>
    %12 = math.rsqrt %11 : vector<8x1xf32>
    %13 = arith.mulf %8, %12 : vector<8x1xf32>
    %14 = vector.broadcast %13 : vector<8x1xf32> to vector<8x256xf32>
    %15 = arith.mulf %0, %14 : vector<8x256xf32>
    %16 = vector.broadcast %9 : vector<8x1xf32> to vector<8x256xf32>
    %17 = arith.addf %15, %16 : vector<8x256xf32>
    %18 = vector.broadcast %10 : vector<8x1xf32> to vector<8x256xf32>
    %19 = arith.maximumf %17, %18 : vector<8x256xf32>
    %c0_4 = arith.constant 0 : index
    %c0_5 = arith.constant 0 : index
    %20 = vector.load %arg3[%c0_4, %c0_5] : memref<8x256xf32, #tpu.memory_space<vmem>>, vector<8x256xf32>
    tpu.vector_store %arg3[%c0_4, %c0_5], %19 {strides = array<i32>} : memref<8x256xf32, #tpu.memory_space<vmem>>, vector<8x256xf32>,
    return
  }
  func.func @transform_0(%arg0: i32) -> (i32, i32) {
    %c0_i32 = arith.constant 0 : i32
    %c0_i32_0 = arith.constant 0 : i32
    return %arg0, %c0_i32 : i32, i32
  }
  func.func @transform_1(%arg0: i32) -> (i32, i32) {
    %c0_i32 = arith.constant 0 : i32
    %c0_i32_0 = arith.constant 0 : i32
    return %arg0, %c0_i32 : i32, i32
  }
  func.func @transform_2(%arg0: i32) -> (i32, i32) {
    %c0_i32 = arith.constant 0 : i32
    %c0_i32_0 = arith.constant 0 : i32
    return %arg0, %c0_i32 : i32, i32
  }
}

</mosaic_0001>

<llo_original>
// kernel: frn_forward.1
$region0: #{frn_forward.1}
  #allocation0 [shape = 'u32[]', space=smem, size = 0x4, offset = 0x4, fixed_abs, tag = 'smem constant byte address 0x4 - core index']
  #allocation1 [shape = 'u32[72,128]{1,0:T(1,128)}', space=vmem, size = 0x9000, scoped, tag = 'internal scratch']
  %s0 = inlined_call_operand.vmem [shape: f32[8,256], index: 0, kind: input, shape index: {}]
  %s1 = inlined_call_operand.vmem [shape: f32[8,4], index: 1, kind: input, shape index: {}]
  %s2 = inlined_call_operand.vmem [shape: f32[8,256], index: 2, kind: output, shape index: {}]
  %s3 = sld [smem:[#allocation0]]
  $region18: #{frn_forward.1} parent=0
    _
  %s5 = ssub.s32 1, %s3
  %s6 = scalar_select 0, %s5, %s3
  // Predicated region
  $region2: #{frn_forward.1} parent=0 // pred_check
    _
  $region3: #{frn_forward.1} parent=0 // pred_check_branch
    %8 = sbr.rel (0) target = $region5
  $region4: #{frn_forward.1} parent=0 // pred_region
    _
  $region5: #{frn_forward.1} parent=0 // pred_fallthru
    _
  // Predicated region
  $region6: #{frn_forward.1} parent=0 // pred_check
    _
  $region7: #{frn_forward.1} parent=0 // pred_check_branch
    %10 = sbr.rel (0) target = $region9
  $region8: #{frn_forward.1} parent=0 // pred_region
    _
  $region9: #{frn_forward.1} parent=0 // pred_fallthru
    _
  %v11 = vld [vmem:[%s0] sm:$0xff]
  %v12 = vld [vmem:[%s0 + $0x8] sm:$0xff]
  %v13 = vmul.f32 %v11, %v11
  %v14 = vmul.f32 %v12, %v12
  %v15 = vadd.f32 %v13, %v14
  %16 = vadd.xlane.f32.xlu0 %v15
  %v17 = vpop.xlane.xlu0 %16
  %v18 = vmul.f32 %v17, 0.00390625
  %v19 = vld [vmem:[%s1] sm:$0xff]
  %v20 = vadd.f32 %v18, %v19
  %v21 = vrsqrt.pop %v20
  %v22 = vmul.f32 %v21, %v20
  %v23 = vmul.f32 %v22, %v21
  %v24 = vmul.f32 0.5, %v23
  %v25 = vsub.f32 1.5, %v24
  %v26 = vmul.f32 %v21, %v25
  %vm27 = vweird.f32 %v20
  %vm28 = vweird.f32 %v21
  %vm29 = vmor %vm27, %vm28
  %v30 = vsel %vm29, %v21, %v26
  %32 = vrot.lane.b32.xlu0 %v30, 1
  %v33 = vpop.permute.xlu0 %32
  %v35 = vmul.f32 %v19, %v33
  %37 = vset.pattern.permute.xlu0 1
  %38 = vperm.xlu0 %37, %v35
  %v39 = vpop.permute.xlu0 %38
  %v41 = vmul.f32 %v11, %v39
  %v42 = vmul.f32 %v12, %v39
  %44 = vset.pattern.permute.xlu0 2
  %45 = vperm.xlu0 %44, %v19
  %v46 = vpop.permute.xlu0 %45
  %v48 = vadd.f32 %v41, %v46
  %v49 = vadd.f32 %v42, %v46
  %50 = vset.pattern.permute.xlu0 3
  %51 = vperm.xlu0 %50, %v19
  %v52 = vpop.permute.xlu0 %51
  %v54 = vmax.f32 %v48, %v52
  %v55 = vmax.f32 %v49, %v52
  %56 = vst [vmem:[%s2] sm:$0xff] %v54
  %57 = vst [vmem:[%s2 + $0x8] sm:$0xff] %v55
  // Predicated region
  $region10: #{frn_forward.1} parent=0 // pred_check
    _
  $region11: #{frn_forward.1} parent=0 // pred_check_branch
    %59 = sbr.rel (0) target = $region13
  $region12: #{frn_forward.1} parent=0 // pred_region
    _
  $region13: #{frn_forward.1} parent=0 // pred_fallthru
    _
  // Predicated region
  $region14: #{frn_forward.1} parent=0 // pred_check
    _
  $region15: #{frn_forward.1} parent=0 // pred_check_branch
    %61 = sbr.rel (0) target = $region17
  $region16: #{frn_forward.1} parent=0 // pred_region
    _
  $region17: #{frn_forward.1} parent=0 // pred_fallthru
    _

</llo_original>
